<compile_context>
chip_gen: v5e
topology: v5e:2x2
jax: 0.10.0
libtpu: 0.0.40
codegen_flags: <defaults>
</compile_context>

<pallas_src>
import jax
import jax.numpy as jnp
import numpy as np
from jax.experimental import pallas as pl
from jax.experimental.pallas import tpu as pltpu

SHIFT = jnp.array([-0.030, -0.088, -0.188], jnp.float32)
SCALE = jnp.array([0.458, 0.448, 0.450], jnp.float32)


# ---------------------------------------------------------------------------
# Pallas kernel
# ---------------------------------------------------------------------------
def _scaling_kernel(a_ref, b_ref, x_ref, o_ref):
    """o = x * a + b with per-(n, c) scalars read from SMEM.

      a_ref / b_ref : SMEM (M,) scalar-prefetch arrays (a = 1/scale, b = -shift/scale)
      x_ref / o_ref : (1, TR, TL) tile; each block covers exactly one channel plane slice
    """
    r = pl.program_id(0)                       # (n, c) row -> one channel per block
    a = a_ref[r]
    b = b_ref[r]
    x = x_ref[...].astype(jnp.float32)         # in-kernel cast (free on the VPU)
    o_ref[...] = (x * a + b).astype(o_ref.dtype)


# ---------------------------------------------------------------------------
# Wrapper
# ---------------------------------------------------------------------------
def scaling_layer(x_nchw, shift=SHIFT, scale=SCALE, *,
                  target_block_bytes=2 << 20,    # ~2 MiB x-blocks (fits all gens)
                  lane_max=1024,
                  out_dtype=jnp.float32):
    """Pallas ScalingLayer.forward.  x: (N, C, H, W) -> (N, C, H, W)."""
    N, C, H, W = x_nchw.shape
    assert shift.shape == (C,) and scale.shape == (C,)
    M = N * C
    L = H * W

    # ---- lane tile: largest multiple of 128 that divides L (<= lane_max) ----
    if L % 128 == 0:
        TL = 128
        while TL * 2 <= lane_max and L % (TL * 2) == 0:
            TL *= 2
        R = L // TL
    else:
        # Ragged spatial extent: fall back to a full-width lane block.
        TL = L
        R = 1

    # ---- sublane tile: fatten rows up to ~target_block_bytes per block ------
    target_rows = max(1, (target_block_bytes // 4) // TL)
    if R <= 8 or R <= target_rows:
        TR = R                                   # full extent (always legal)
    else:
        TR = max(8, (min(R, target_rows) // 8) * 8)
        # Prefer a TR that divides R exactly so no ragged (masked) trailing block.
        t = TR
        while t >= 8 and R % t != 0:
            t -= 8
        if t >= 8:
            TR = t
        # else: keep TR; the single trailing partial block uses a masked store,
        # which is still correct for this elementwise op.

    # Free reshape (row-major contiguous), native dtype -> cast in kernel.
    x3 = x_nchw.reshape(M, R, TL)

    # Per-(n, c) folded constants for a single FMA:  o = x * a + b.
    inv_scale = (1.0 / scale).astype(jnp.float32)
    a_rows = jnp.tile(inv_scale, N)                                   # (M,)
    b_rows = jnp.tile((-shift.astype(jnp.float32)) * inv_scale, N)    # (M,)

    grid = (M, pl.cdiv(R, TR))

    out = pl.pallas_call(
        _scaling_kernel,
        out_shape=jax.ShapeDtypeStruct((M, R, TL), out_dtype),
        grid_spec=pltpu.PrefetchScalarGridSpec(
            num_scalar_prefetch=2,               # a_rows, b_rows -> SMEM
            grid=grid,
            in_specs=[
                pl.BlockSpec((1, TR, TL), lambda i, j, a, b: (i, j, 0)),
            ],
            out_specs=pl.BlockSpec((1, TR, TL), lambda i, j, a, b: (i, j, 0)),
        ),
        compiler_params=pltpu.CompilerParams(
            dimension_semantics=("parallel", "parallel")),
    )(a_rows, b_rows, x3)

    return out.reshape(N, C, H, W)


# ---------------------------------------------------------------------------
# Pure-JAX reference (matches the PyTorch module)
# ---------------------------------------------------------------------------
def scaling_layer_reference(x_nchw, shift=SHIFT, scale=SCALE):
    x = x_nchw.astype(jnp.float32)
    return (x - shift[None, :, None, None]) / scale[None, :, None, None]


if __name__ == "__main__":
    key = jax.random.PRNGKey(0)
    N, C, H, W = 2, 3, 16, 16                    # module buffers imply C = 3
    x = jax.random.uniform(key, (N, C, H, W), jnp.float32, -1.0, 1.0)

    out = jax.block_until_ready(scaling_layer(x))
    ref = jax.block_until_ready(scaling_layer_reference(x))

    assert out.shape == (N, C, H, W), out.shape
    if not np.allclose(np.asarray(out), np.asarray(ref), rtol=1e-5, atol=1e-6):
        max_err = np.max(np.abs(np.asarray(out) - np.asarray(ref)))
        raise AssertionError(f"mismatch: max abs err = {max_err}")
    print("KERNEL_OK")
</pallas_src>

<mosaic_0001>
module attributes {stable_mosaic.version = 11 : i64} {
  func.func @_scaling_kernel(%arg0: i32, %arg1: i32, %arg2: memref<6xf32, #tpu.memory_space<smem>>, %arg3: memref<6xf32, #tpu.memory_space<smem>>, %arg4: memref<1x1x256xf32, #tpu.memory_space<vmem>>, %arg5: memref<1x1x256xf32, #tpu.memory_space<vmem>>) attributes {dimension_semantics = [#tpu.dimension_semantics<parallel>, #tpu.dimension_semantics<parallel>], iteration_bounds = array<i64: 6, 1>, scalar_prefetch = 2 : i64, scratch_operands = 0 : i64, tpu.core_type = #tpu.core_type<tc>, window_params = [{transform_indices = @transform_0, window_bounds = array<i64: 1, 1, 256>}, {transform_indices = @transform_1, window_bounds = array<i64: 1, 1, 256>}]} {
    %0 = arith.index_cast %arg0 : i32 to index
    %1 = memref.load %arg2[%0] : memref<6xf32, #tpu.memory_space<smem>>
    %2 = arith.index_cast %arg0 : i32 to index
    %3 = memref.load %arg3[%2] : memref<6xf32, #tpu.memory_space<smem>>
    %c0 = arith.constant 0 : index
    %c0_0 = arith.constant 0 : index
    %c0_1 = arith.constant 0 : index
    %4 = vector.load %arg4[%c0, %c0_0, %c0_1] : memref<1x1x256xf32, #tpu.memory_space<vmem>>, vector<1x1x256xf32>
    %5 = vector.broadcast %1 : f32 to vector<1x1x256xf32>
    %6 = arith.mulf %4, %5 : vector<1x1x256xf32>
    %7 = vector.broadcast %3 : f32 to vector<1x1x256xf32>
    %8 = arith.addf %6, %7 : vector<1x1x256xf32>
    %c0_2 = arith.constant 0 : index
    %c0_3 = arith.constant 0 : index
    %c0_4 = arith.constant 0 : index
    %9 = vector.load %arg5[%c0_2, %c0_3, %c0_4] : memref<1x1x256xf32, #tpu.memory_space<vmem>>, vector<1x1x256xf32>
    tpu.vector_store %arg5[%c0_2, %c0_3, %c0_4], %8 {strides = array<i32>} : memref<1x1x256xf32, #tpu.memory_space<vmem>>, vector<1x1x256xf32>,
    return
  }
  func.func @transform_0(%arg0: i32, %arg1: i32, %arg2: memref<6xf32, #tpu.memory_space<smem>>, %arg3: memref<6xf32, #tpu.memory_space<smem>>) -> (i32, i32, i32) {
    %c0_i32 = arith.constant 0 : i32
    %c0_i32_0 = arith.constant 0 : i32
    return %arg0, %arg1, %c0_i32 : i32, i32, i32
  }
  func.func @transform_1(%arg0: i32, %arg1: i32, %arg2: memref<6xf32, #tpu.memory_space<smem>>, %arg3: memref<6xf32, #tpu.memory_space<smem>>) -> (i32, i32, i32) {
    %c0_i32 = arith.constant 0 : i32
    %c0_i32_0 = arith.constant 0 : i32
    return %arg0, %arg1, %c0_i32 : i32, i32, i32
  }
}

</mosaic_0001>

<llo_original>
// kernel: tpu_custom_call.1
$region0: #{tpu_custom_call.1}
  #allocation0 [shape = 'u32[]', space=smem, size = 0x4, offset = 0x4, fixed_abs, tag = 'smem constant byte address 0x4 - core index']
  #allocation1 [shape = 'u32[72,128]{1,0:T(1,128)}', space=vmem, size = 0x9000, scoped, tag = 'internal scratch']
  #allocation2 [shape = 's32[1]{0}', space=sflag, size = 0x4, scoped, tag = 'scoped memory for tpu_custom_call.1']
  #allocation3 [shape = 'u8[512]{0}', space=smem, size = 0x200, scoped, tag = 'prefetched SMEM operand 0']
  #allocation4 [shape = 'u8[512]{0}', space=smem, size = 0x200, scoped, tag = 'prefetched SMEM operand 1']
  %s0 = inlined_call_operand.hbm [shape: f32[6], index: 0, kind: input, shape index: {}]
  %s1 = inlined_call_operand.hbm [shape: f32[6], index: 1, kind: input, shape index: {}]
  %s2 = inlined_call_operand.hbm [shape: f32[6,1,256], index: 2, kind: input, shape index: {}]
  %s3 = inlined_call_operand.hbm [shape: f32[6,1,256], index: 3, kind: output, shape index: {}]
  %s4 = sld [smem:[#allocation0]]
  $region41: #{tpu_custom_call.1} parent=0
    _
  %s6 = ssub.s32 1, %s4
  %s7 = scalar_select 0, %s6, %s4
  %s9 = sshll.u32 %s0, 4
  %s10 = int_to_ptr.hbm [resolvable:$true] %s9
  %12 = dma.hbm_to_smem %s10, 16, [#allocation3], [#allocation2]
  %s14 = sshll.u32 %s1, 4
  %s15 = int_to_ptr.hbm [resolvable:$true] %s14
  %17 = dma.hbm_to_smem %s15, 16, [#allocation4], [#allocation2]
  %19 = dma.done [#allocation2], 32
  %20 = sfence
  $region1: #{tpu_custom_call.1} parent=0
    #allocation5 [shape = 'u8[2048]{0}', space=vmem, size = 0x800, scoped, tag = 'input window, operand 2']
    #allocation6 [shape = 's32[2]{0}', space=sflag, size = 0x8, scoped, tag = 'scoped memory for tpu_custom_call.1']
    #allocation7 [shape = 's32[2]{0}', space=sflag, size = 0x8, scoped, tag = 'scoped memory for tpu_custom_call.1']
    #allocation8 [shape = 'u8[2048]{0}', space=vmem, size = 0x800, scoped, tag = 'output window, operand 0']
    %21 = vsyncpa [#allocation6], 0
    %s22 = scalar_lea.sflag [#allocation6], 1
    %23 = vsyncpa %s22, 0
    %24 = vsyncpa [#allocation7], 0
    %s25 = scalar_lea.sflag [#allocation7], 1
    %26 = vsyncpa %s25, 0
    loop: start=0, step=1, limit=8
    $region2: #{tpu_custom_call.1} parent=1 // loop_pre_header
      _
    $region3: #{tpu_custom_call.1} parent=1 // loop_header
      %s28 = sphi 0, %s32
      %p29 = scmp.ge.s32.totalorder %s28, 8
      %s35 = sphi 0, %s47
      %s36 = sphi 0, %s43
      %s37 = sphi 0, %s35
      %s38 = sphi 0, %s36
      %s39 = sphi 0, %s37
      %s40 = sphi 0, %s38
      %s52 = sphi 0, %s54
      %s55 = sphi 0, %s52
      %s56 = sphi 0, %s55
      %s72 = sphi 0, %s56
      %s80 = sphi 0, %s82
      %s83 = sphi 0, %s80
      %s84 = sphi 0, %s83
      %s100 = sphi 0, %s84
    $region4: #{tpu_custom_call.1} parent=1 // loop_header_branch
      %31 = sbr.rel (%p29) target = $region8
    $region5: #{tpu_custom_call.1} parent=1 // loop_body
      %s33 = ssub.s32 %s28, 1
      %s34 = ssub.s32 %s28, 2
      %s41 = sadd.s32 1, %s36
      %p42 = scmp.ge.s32.totalorder %s41, 1
      %s43 = scalar_select %p42, 0, %s41
      %s44 = sadd.s32 1, %s35
      %s45 = scalar_select %p42, %s44, %s35
      %p46 = scmp.ge.s32.totalorder %s45, 6
      %s47 = scalar_select %p46, 0, %s45
      %s48 = ssub.s32 %s35, %s47
      %s49 = ssub.s32 %s36, %s43
      %s50 = sor.u32 %s48, %s49
      %p51 = scmp.eq.s32.totalorder %s50, 0
      %s53 = sadd.s32 %s52, 1
      %s54 = scalar_select %p51, %s52, %s53
      %p57 = pneg %p51
      %p58 = scmp.eq.s32.totalorder %s28, 5
      %p59 = por %p57, %p58
      %p60 = scmp.ne.s32.totalorder %s52, %s55
      %p61 = scmp.eq.s32.totalorder %s28, 0
      %p62 = por %p60, %p61
      %p63 = scmp.ne.s32.totalorder %s52, %s55
      %p64 = scmp.eq.s32.totalorder %s33, 5
      %p65 = por %p63, %p64
      %p66 = scmp.ne.s32.totalorder %s55, %s56
      %p67 = scmp.eq.s32.totalorder %s33, 0
      %p68 = por %p66, %p67
      %p69 = scmp.ne.s32.totalorder %s55, %s56
      %p70 = scmp.eq.s32.totalorder %s34, 5
      %p71 = por %p69, %p70
      %p73 = scmp.ne.s32.totalorder %s56, %s72
      %p74 = scmp.eq.s32.totalorder %s34, 0
      %p75 = por %p73, %p74
      %s76 = ssub.s32 %s35, %s47
      %s77 = ssub.s32 %s36, %s43
      %s78 = sor.u32 %s76, %s77
      %p79 = scmp.eq.s32.totalorder %s78, 0
      %s81 = sadd.s32 %s80, 1
      %s82 = scalar_select %p79, %s80, %s81
      %p85 = pneg %p79
      %p86 = scmp.eq.s32.totalorder %s28, 5
      %p87 = por %p85, %p86
      %p88 = scmp.ne.s32.totalorder %s80, %s83
      %p89 = scmp.eq.s32.totalorder %s28, 0
      %p90 = por %p88, %p89
      %p91 = scmp.ne.s32.totalorder %s80, %s83
      %p92 = scmp.eq.s32.totalorder %s33, 5
      %p93 = por %p91, %p92
      %p94 = scmp.ne.s32.totalorder %s83, %s84
      %p95 = scmp.eq.s32.totalorder %s33, 0
      %p96 = por %p94, %p95
      %p97 = scmp.ne.s32.totalorder %s83, %s84
      %p98 = scmp.eq.s32.totalorder %s34, 5
      %p99 = por %p97, %p98
      %p101 = scmp.ne.s32.totalorder %s84, %s100
      %p102 = scmp.eq.s32.totalorder %s34, 0
      %p103 = por %p101, %p102
      %p104 = scmp.le.s32.totalorder 1, %s28
      %p105 = scmp.lt.s32.totalorder %s28, 7
      %p106 = pnand %p104, %p105
      %p107 = pneg %p106
      // Predicated region
      $region9: #{tpu_custom_call.1} parent=5 // pred_check
        _
      $region10: #{tpu_custom_call.1} parent=5 // pred_check_branch
        %109 = sbr.rel (%p106) target = $region12
      $region11: #{tpu_custom_call.1} parent=5 // pred_region
        %s110 = ssub.s32 %s28, 1
      $region12: #{tpu_custom_call.1} parent=5 // pred_fallthru
        _
      %p111 = scmp.lt.s32.totalorder %s28, 6
      // Predicated region
      $region13: #{tpu_custom_call.1} parent=5 // pred_check
        %p112 = pneg %p111
      $region14: #{tpu_custom_call.1} parent=5 // pred_check_branch
        %114 = sbr.rel (%p112) target = $region16
      $region15: #{tpu_custom_call.1} parent=5 // pred_region
        // Predicated region
        $region17: #{tpu_custom_call.1} parent=15 // pred_check
          %p115 = pneg %p62
        $region18: #{tpu_custom_call.1} parent=15 // pred_check_branch
          %117 = sbr.rel (%p115) target = $region20
        $region19: #{tpu_custom_call.1} parent=15 // pred_region
          %s118 = sand.u32 %s52, 1
          %s119 = scalar_lea.sflag [#allocation6], %s118
          %s120 = sand.u32 %s52, 1
          %s121 = smul.addr %s120, 2
          %s122 = scalar_lea.vmem [#allocation5], %s121
          %124 = vsyncadd %s119, 0
          %s125 = smul.addr %s36, 2
          %s126 = smul.addr %s35, 2
          %s127 = sadd.s32 %s125, %s126
          %s128 = scalar_lea.hbm %s2, %s127
          %s130 = sshll.u32 %s128, 4
          %s131 = int_to_ptr.hbm [resolvable:$true] %s130
          %s132 = sshll.u32 %s122, 4
          %s133 = int_to_ptr.vmem [resolvable:$true] %s132
          %135 = dma.hbm_to_vmem [thread:$0]  %s131, 32, %s133, %s119
        $region20: #{tpu_custom_call.1} parent=15 // pred_fallthru
          _
      $region16: #{tpu_custom_call.1} parent=5 // pred_fallthru
        _
      %p136 = scmp.le.s32.totalorder 1, %s28
      %p137 = scmp.lt.s32.totalorder %s28, 7
      %p138 = pnand %p136, %p137
      %p139 = pneg %p138
      // Predicated region
      $region21: #{tpu_custom_call.1} parent=5 // pred_check
        _
      $region22: #{tpu_custom_call.1} parent=5 // pred_check_branch
        %141 = sbr.rel (%p138) target = $region24
      $region23: #{tpu_custom_call.1} parent=5 // pred_region
        %s142 = ssub.s32 %s28, 1
        %s143 = sand.u32 %s55, 1
        %s144 = scalar_lea.sflag [#allocation6], %s143
        %s145 = sand.u32 %s55, 1
        %s146 = smul.addr %s145, 2
        %s147 = scalar_lea.vmem [#allocation5], %s146
        // Predicated region
        $region25: #{tpu_custom_call.1} parent=23 // pred_check
          %p148 = pneg %p68
        $region26: #{tpu_custom_call.1} parent=23 // pred_check_branch
          %150 = sbr.rel (%p148) target = $region28
        $region27: #{tpu_custom_call.1} parent=23 // pred_region
          %152 = dma.done %s144, 32
        $region28: #{tpu_custom_call.1} parent=23 // pred_fallthru
          _
        %s153 = sand.u32 %s55, 1
        %s154 = scalar_lea.sflag [#allocation6], %s153
        %s155 = sand.u32 %s55, 1
        %s156 = smul.addr %s155, 2
        %s157 = scalar_lea.vmem [#allocation5], %s156
        %p158 = pneg %p68
        %p159 = pneg %p65
        %p160 = pneg %p96
        %p161 = pneg %p93
        %s162 = sand.u32 %s83, 1
        %s163 = scalar_lea.sflag [#allocation7], %s162
        %s164 = sand.u32 %s83, 1
        %s165 = smul.addr %s164, 2
        %s166 = scalar_lea.vmem [#allocation8], %s165
        %s167 = sld [smem:[#allocation3 + %s37]]
        %s168 = sld [smem:[#allocation4 + %s37]]
        %v169 = vld [vmem:[%s147] sm:$0x3]
        %v170 = vstv %s167
        %v171 = vmul.f32 %v169, %v170
        %v172 = vstv %s168
        %v173 = vadd.f32 %v171, %v172
        %v174 = vlaneseq
        %vm175 = vcmp.ge.s32.totalorder %v174, 0
        %vm176 = vcmp.lt.s32.totalorder %v174, 256
        %vm177 = vmand %vm175, %vm176
        %178 = vst.msk [vmem:[%s166] sm:$0x3] %vm177, %v173
        %s179 = sand.u32 %s83, 1
        %s180 = scalar_lea.sflag [#allocation7], %s179
        %s181 = sand.u32 %s83, 1
        %s182 = smul.addr %s181, 2
        %s183 = scalar_lea.vmem [#allocation8], %s182
        // Predicated region
        $region29: #{tpu_custom_call.1} parent=23 // pred_check
          %p184 = pneg %p93
        $region30: #{tpu_custom_call.1} parent=23 // pred_check_branch
          %186 = sbr.rel (%p184) target = $region32
        $region31: #{tpu_custom_call.1} parent=23 // pred_region
          %188 = vsyncadd %s180, 0
          %s189 = smul.addr %s38, 2
          %s190 = smul.addr %s37, 2
          %s191 = sadd.s32 %s189, %s190
          %s192 = scalar_lea.hbm %s3, %s191
          %s194 = sshll.u32 %s183, 4
          %s195 = int_to_ptr.vmem [resolvable:$true] %s194
          %s196 = sshll.u32 %s192, 4
          %s197 = int_to_ptr.hbm [resolvable:$true] %s196
          %199 = dma.vmem_to_hbm [thread:$0]  %s195, 32, %s197, %s180
        $region32: #{tpu_custom_call.1} parent=23 // pred_fallthru
          _
      $region24: #{tpu_custom_call.1} parent=5 // pred_fallthru
        _
      %p200 = scmp.le.s32.totalorder 2, %s28
      // Predicated region
      $region33: #{tpu_custom_call.1} parent=5 // pred_check
        %p201 = pneg %p200
      $region34: #{tpu_custom_call.1} parent=5 // pred_check_branch
        %203 = sbr.rel (%p201) target = $region36
      $region35: #{tpu_custom_call.1} parent=5 // pred_region
        %s204 = ssub.s32 %s28, 2
        // Predicated region
        $region37: #{tpu_custom_call.1} parent=35 // pred_check
          %p205 = pneg %p99
        $region38: #{tpu_custom_call.1} parent=35 // pred_check_branch
          %207 = sbr.rel (%p205) target = $region40
        $region39: #{tpu_custom_call.1} parent=35 // pred_region
          %s208 = sand.u32 %s84, 1
          %s209 = scalar_lea.sflag [#allocation7], %s208
          %s210 = sand.u32 %s84, 1
          %s211 = smul.addr %s210, 2
          %s212 = scalar_lea.vmem [#allocation8], %s211
          %214 = dma.done %s209, 32
        $region40: #{tpu_custom_call.1} parent=35 // pred_fallthru
          _
      $region36: #{tpu_custom_call.1} parent=5 // pred_fallthru
        _
    $region6: #{tpu_custom_call.1} parent=1 // loop_footer
      %s32 = sadd.s32 1, %s28
    $region7: #{tpu_custom_call.1} parent=1 // loop_footer_branch
      %27 = sbr.rel target = $region3
    $region8: #{tpu_custom_call.1} parent=1 // loop_exit
      _
    %215 = vsyncpa [#allocation6], 1
    %s216 = scalar_lea.sflag [#allocation6], 1
    %217 = vsyncpa %s216, 1
    %218 = vsyncpa [#allocation7], 1
    %s219 = scalar_lea.sflag [#allocation7], 1
    %220 = vsyncpa %s219, 1

</llo_original>
